<compile_context>
chip_gen: v7x
topology: tpu7x:2x2x1
jax: 0.10.0
libtpu: 0.0.40
codegen_flags: <defaults>
</compile_context>

<pallas_src>
import jax
import jax.numpy as jnp
from jax import lax
from jax.experimental import pallas as pl
from jax.experimental.pallas import tpu as pltpu


def _make_ce_kernel(n_valid, c_valid, tile_n, tile_c, n_tiles_c, mask_rows, mask_cols):
    """Builds the kernel body, statically specialized on masking / class tiling."""

    def kernel(logits_ref, labels_ref, out_ref, m_ref, s_ref, t_ref):
        i = pl.program_id(0)                               # batch tile ("parallel")
        j = pl.program_id(1)                               # class tile ("arbitrary")

        x = logits_ref[...].astype(jnp.float32)            # (tile_n, tile_c) f32 math
        lab = labels_ref[...]                               # (tile_n, 1) int32
        tn, tc = x.shape

        col = lax.broadcasted_iota(jnp.int32, (tn, tc), 1) + j * tile_c
        if mask_cols:
            # Padded class columns must never win the max / contribute to sum-exp.
            x = jnp.where(col < c_valid, x, -jnp.inf)

        # Target logit for this class tile: one-hot select + lane reduce (no gather).
        tgt_part = jnp.sum(jnp.where(col == lab, x, 0.0), axis=-1, keepdims=True)
        m_tile = jnp.max(x, axis=-1, keepdims=True)         # (tile_n, 1)

        def write_out(lse, tgt):
            nll = lse - tgt                                  # (tile_n, 1)
            if mask_rows:
                row = lax.broadcasted_iota(jnp.int32, (tn, 1), 0) + i * tile_n
                nll = jnp.where(row < n_valid, nll, 0.0)
            out_ref[...] = nll

        if n_tiles_c == 1:
            # Fast path (classification heads): whole class axis in one tile,
            # no scratch carries needed.
            s = jnp.sum(jnp.exp(x - m_tile), axis=-1, keepdims=True)
            write_out(m_tile + jnp.log(s), tgt_part)
        else:
            # Streaming (online) log-sum-exp across class tiles.
            @pl.when(j == 0)
            def _init():
                m_ref[...] = jnp.full_like(m_ref, -jnp.inf)
                s_ref[...] = jnp.zeros_like(s_ref)
                t_ref[...] = jnp.zeros_like(t_ref)

            m_prev = m_ref[...]
            m_new = jnp.maximum(m_prev, m_tile)
            s_ref[...] = (s_ref[...] * jnp.exp(m_prev - m_new)
                          + jnp.sum(jnp.exp(x - m_new), axis=-1, keepdims=True))
            m_ref[...] = m_new
            t_ref[...] += tgt_part

            @pl.when(j == n_tiles_c - 1)
            def _finalize():
                write_out(m_ref[...] + jnp.log(s_ref[...]), t_ref[...])

    return kernel


def cross_entropy_loss(logits, labels, *, tile_n=None, tile_c=None):
    """Mean cross-entropy over logits [N, C] and int labels [N] (== nn.CrossEntropyLoss)."""
    n, c = logits.shape
    labels = labels.reshape(-1).astype(jnp.int32)
    assert labels.shape == (n,)

    # --- class tiling --------------------------------------------------------
    # Keep the full class axis resident when it is small (classification heads);
    # only stream over lane-aligned class tiles for large vocabularies.
    if tile_c is None:
        tile_c = c if c <= 4096 else 2048
    assert tile_c == c or tile_c % 128 == 0, "tile_c must be C or a multiple of 128"

    # --- batch tiling --------------------------------------------------------
    # Largest batch tile (multiple of 8) whose f32 working block stays well
    # inside the scoped-VMEM default on every generation, leaving room for the
    # double-buffered input DMA.
    if tile_n is None:
        budget = 2 * 1024 * 1024                       # f32 working bytes per block
        tile_n = max(8, min(512, (budget // (tile_c * 4)) // 8 * 8))
        tile_n = min(tile_n, pl.cdiv(n, 8) * 8)
    assert tile_n % 8 == 0

    n_pad = pl.cdiv(n, tile_n) * tile_n
    c_pad = pl.cdiv(c, tile_c) * tile_c
    mask_rows = n_pad != n
    mask_cols = c_pad != c
    if mask_rows or mask_cols:
        logits = jnp.pad(logits, ((0, n_pad - n), (0, c_pad - c)))
    if mask_rows:
        labels = jnp.pad(labels, (0, n_pad - n))
    labels2d = labels.reshape(n_pad, 1)

    n_tiles_n = n_pad // tile_n
    n_tiles_c = c_pad // tile_c

    nll = pl.pallas_call(
        _make_ce_kernel(n, c, tile_n, tile_c, n_tiles_c, mask_rows, mask_cols),
        out_shape=jax.ShapeDtypeStruct((n_pad, 1), jnp.float32),
        grid=(n_tiles_n, n_tiles_c),
        in_specs=[
            pl.BlockSpec((tile_n, tile_c), lambda i, j: (i, j)),
            pl.BlockSpec((tile_n, 1), lambda i, j: (i, 0)),
        ],
        out_specs=pl.BlockSpec((tile_n, 1), lambda i, j: (i, 0)),
        scratch_shapes=[pltpu.VMEM((tile_n, 1), jnp.float32)] * 3,
        compiler_params=pltpu.CompilerParams(
            dimension_semantics=("parallel", "arbitrary"),
        ),
    )(logits, labels2d)

    # Padded rows were written as 0, so summing n_pad rows and dividing by the
    # true N gives exactly the mean reduction.
    return jnp.sum(nll) / n


def _reference_loss(logits, labels):
    """Pure-JAX reference mirroring torch.nn.CrossEntropyLoss (mean reduction)."""
    logp = jax.nn.log_softmax(logits.astype(jnp.float32), axis=-1)
    nll = -jnp.take_along_axis(logp, labels.reshape(-1, 1).astype(jnp.int32), axis=1)
    return jnp.mean(nll)


if __name__ == "__main__":
    key = jax.random.PRNGKey(0)
    k1, k2, k3, k4 = jax.random.split(key, 4)

    # 1) Classification-head shapes, multi batch-tile path (grid 3x1).
    N, C = 24, 32
    logits = jax.random.normal(k1, (N, C), dtype=jnp.float32)
    labels = jax.random.randint(k2, (N,), 0, C, dtype=jnp.int32)
    loss = cross_entropy_loss(logits, labels, tile_n=8)
    jax.block_until_ready(loss)
    ref = _reference_loss(logits, labels)
    assert jnp.allclose(loss, ref, atol=1e-5, rtol=1e-5), (loss, ref)

    # 2) Ragged batch (row padding + masking) with auto tile selection.
    loss2 = cross_entropy_loss(logits[:22], labels[:22])
    jax.block_until_ready(loss2)
    ref2 = _reference_loss(logits[:22], labels[:22])
    assert jnp.allclose(loss2, ref2, atol=1e-5, rtol=1e-5), (loss2, ref2)

    # 3) Streaming class-tile path (online log-sum-exp) + class padding/masking.
    N3, C3 = 16, 300
    logits3 = jax.random.normal(k3, (N3, C3), dtype=jnp.float32)
    labels3 = jax.random.randint(k4, (N3,), 0, C3, dtype=jnp.int32)
    loss3 = cross_entropy_loss(logits3, labels3, tile_n=8, tile_c=128)
    jax.block_until_ready(loss3)
    ref3 = _reference_loss(logits3, labels3)
    assert jnp.allclose(loss3, ref3, atol=1e-5, rtol=1e-5), (loss3, ref3)

    print("KERNEL_OK")
</pallas_src>

<mosaic_0001>
module attributes {stable_mosaic.version = 11 : i64} {
  func.func @kernel(%arg0: i32, %arg1: i32, %arg2: memref<8x32xf32, #tpu.memory_space<vmem>>, %arg3: memref<8x1xi32, #tpu.memory_space<vmem>>, %arg4: memref<8x1xf32, #tpu.memory_space<vmem>>, %arg5: memref<8x1xf32, #tpu.memory_space<vmem>>, %arg6: memref<8x1xf32, #tpu.memory_space<vmem>>, %arg7: memref<8x1xf32, #tpu.memory_space<vmem>>) attributes {dimension_semantics = [#tpu.dimension_semantics<parallel>, #tpu.dimension_semantics<arbitrary>], iteration_bounds = array<i64: 3, 1>, scalar_prefetch = 0 : i64, scratch_operands = 3 : i64, tpu.core_type = #tpu.core_type<tc>, window_params = [{transform_indices = @transform_0, window_bounds = array<i64: 8, 32>}, {transform_indices = @transform_1, window_bounds = array<i64: 8, 1>}, {transform_indices = @transform_2, window_bounds = array<i64: 8, 1>}]} {
    %c0 = arith.constant 0 : index
    %c0_0 = arith.constant 0 : index
    %0 = vector.load %arg2[%c0, %c0_0] : memref<8x32xf32, #tpu.memory_space<vmem>>, vector<8x32xf32>
    %c0_1 = arith.constant 0 : index
    %c0_2 = arith.constant 0 : index
    %1 = vector.load %arg3[%c0_1, %c0_2] : memref<8x1xi32, #tpu.memory_space<vmem>>, vector<8x1xi32>
    %2 = tpu.iota {dimensions = array<i32: 1>} : vector<8x32xi32>
    %c32_i32 = arith.constant 32 : i32
    %3 = arith.muli %arg1, %c32_i32 : i32
    %4 = vector.broadcast %3 : i32 to vector<8x32xi32>
    %5 = arith.addi %2, %4 : vector<8x32xi32>
    %6 = vector.broadcast %1 : vector<8x1xi32> to vector<8x32xi32>
    %7 = arith.cmpi eq, %5, %6 : vector<8x32xi32>
    %cst = arith.constant 0.000000e+00 : f32
    %8 = vector.broadcast %cst : f32 to vector<8x32xf32>
    %9 = arith.select %7, %0, %8 : vector<8x32xi1>, vector<8x32xf32>
    %cst_3 = arith.constant dense<0.000000e+00> : vector<8xf32>
    %10 = vector.multi_reduction <add>, %9, %cst_3 [1] : vector<8x32xf32> to vector<8xf32>
    %11 = vector.shape_cast %10 : vector<8xf32> to vector<8x1xf32>
    %cst_4 = arith.constant dense<0xFF800000> : vector<8xf32>
    %12 = vector.multi_reduction <maximumf>, %0, %cst_4 [1] : vector<8x32xf32> to vector<8xf32>
    %13 = vector.shape_cast %12 : vector<8xf32> to vector<8x1xf32>
    %14 = vector.broadcast %13 : vector<8x1xf32> to vector<8x32xf32>
    %15 = arith.subf %0, %14 : vector<8x32xf32>
    %16 = math.exp %15 : vector<8x32xf32>
    %cst_5 = arith.constant dense<0.000000e+00> : vector<8xf32>
    %17 = vector.multi_reduction <add>, %16, %cst_5 [1] : vector<8x32xf32> to vector<8xf32>
    %18 = vector.shape_cast %17 : vector<8xf32> to vector<8x1xf32>
    %19 = math.log %18 : vector<8x1xf32>
    %20 = arith.addf %13, %19 : vector<8x1xf32>
    %21 = arith.subf %20, %11 : vector<8x1xf32>
    %c0_6 = arith.constant 0 : index
    %c0_7 = arith.constant 0 : index
    %22 = vector.load %arg4[%c0_6, %c0_7] : memref<8x1xf32, #tpu.memory_space<vmem>>, vector<8x1xf32>
    tpu.vector_store %arg4[%c0_6, %c0_7], %21 {strides = array<i32>} : memref<8x1xf32, #tpu.memory_space<vmem>>, vector<8x1xf32>,
    return
  }
  func.func @transform_0(%arg0: i32, %arg1: i32) -> (i32, i32) {
    %c0_i32 = arith.constant 0 : i32
    return %arg0, %arg1 : i32, i32
  }
  func.func @transform_1(%arg0: i32, %arg1: i32) -> (i32, i32) {
    %c0_i32 = arith.constant 0 : i32
    %c0_i32_0 = arith.constant 0 : i32
    return %arg0, %c0_i32 : i32, i32
  }
  func.func @transform_2(%arg0: i32, %arg1: i32) -> (i32, i32) {
    %c0_i32 = arith.constant 0 : i32
    %c0_i32_0 = arith.constant 0 : i32
    return %arg0, %c0_i32 : i32, i32
  }
}

</mosaic_0001>

<llo_original>
// kernel: tpu_custom_call.1
$region0: #{tpu_custom_call.1}
  #allocation0 [shape = 'u32[]', space=smem, size = 0x4, offset = 0x4, fixed_abs, tag = 'smem constant byte address 0x4 - core index']
  #allocation1 [shape = 'u32[144,128]{1,0:T(1,128)}', space=vmem, size = 0x12000, scoped, tag = 'internal scratch']
  #allocation2 [shape = 'f32[8,1]{1,0:T(8,128)}', space=vmem, size = 0x1000, scoped, tag = 'scratch operand']
  #allocation3 [shape = 'f32[8,1]{1,0:T(8,128)}', space=vmem, size = 0x1000, scoped, tag = 'scratch operand']
  #allocation4 [shape = 'f32[8,1]{1,0:T(8,128)}', space=vmem, size = 0x1000, scoped, tag = 'scratch operand']
  %s0 = inlined_call_operand.vmem [shape: f32[24,32], index: 0, kind: input, shape index: {}]
  %s1 = inlined_call_operand.vmem [shape: s32[24,1], index: 1, kind: input, shape index: {}]
  %s2 = inlined_call_operand.vmem [shape: f32[24,1], index: 2, kind: output, shape index: {}]
  %s3 = sld [smem:[#allocation0]]
  $region41: #{tpu_custom_call.1} parent=0
    _
  %s5 = ssub.s32 1, %s3
  %s6 = scalar_select 0, %s5, %s3
  loop: start=0, step=1, limit=5
  $region2: #{tpu_custom_call.1} parent=0 // loop_pre_header
    _
  $region3: #{tpu_custom_call.1} parent=0 // loop_header
    %s8 = sphi 0, %s12
    %p9 = scmp.ge.s32.totalorder %s8, 5
    %s15 = sphi 0, %s27
    %s16 = sphi 0, %s23
    %s17 = sphi 0, %s15
    %s18 = sphi 0, %s16
    %s19 = sphi 0, %s17
    %s20 = sphi 0, %s18
    %s32 = sphi 0, %s34
    %s35 = sphi 0, %s32
    %s36 = sphi 0, %s35
    %s52 = sphi 0, %s36
    %s58 = sphi 0, %s60
    %s61 = sphi 0, %s58
    %s62 = sphi 0, %s61
    %s78 = sphi 0, %s62
    %s84 = sphi 0, %s86
    %s87 = sphi 0, %s84
    %s88 = sphi 0, %s87
    %s104 = sphi 0, %s88
  $region4: #{tpu_custom_call.1} parent=0 // loop_header_branch
    %11 = sbr.rel (%p9) target = $region8
  $region5: #{tpu_custom_call.1} parent=0 // loop_body
    %s13 = ssub.s32 %s8, 1
    %s14 = ssub.s32 %s8, 2
    %s21 = sadd.s32 1, %s16
    %p22 = scmp.ge.s32.totalorder %s21, 1
    %s23 = scalar_select %p22, 0, %s21
    %s24 = sadd.s32 1, %s15
    %s25 = scalar_select %p22, %s24, %s15
    %p26 = scmp.ge.s32.totalorder %s25, 3
    %s27 = scalar_select %p26, 0, %s25
    %s28 = ssub.s32 %s15, %s27
    %s29 = ssub.s32 %s16, %s23
    %s30 = sor.u32 %s28, %s29
    %p31 = scmp.eq.s32.totalorder %s30, 0
    %s33 = sadd.s32 %s32, 1
    %s34 = scalar_select %p31, %s32, %s33
    %p37 = pneg %p31
    %p38 = scmp.eq.s32.totalorder %s8, 2
    %p39 = por %p37, %p38
    %p40 = scmp.ne.s32.totalorder %s32, %s35
    %p41 = scmp.eq.s32.totalorder %s8, 0
    %p42 = por %p40, %p41
    %p43 = scmp.ne.s32.totalorder %s32, %s35
    %p44 = scmp.eq.s32.totalorder %s13, 2
    %p45 = por %p43, %p44
    %p46 = scmp.ne.s32.totalorder %s35, %s36
    %p47 = scmp.eq.s32.totalorder %s13, 0
    %p48 = por %p46, %p47
    %p49 = scmp.ne.s32.totalorder %s35, %s36
    %p50 = scmp.eq.s32.totalorder %s14, 2
    %p51 = por %p49, %p50
    %p53 = scmp.ne.s32.totalorder %s36, %s52
    %p54 = scmp.eq.s32.totalorder %s14, 0
    %p55 = por %p53, %p54
    %s56 = ssub.s32 %s15, %s27
    %p57 = scmp.eq.s32.totalorder %s56, 0
    %s59 = sadd.s32 %s58, 1
    %s60 = scalar_select %p57, %s58, %s59
    %p63 = pneg %p57
    %p64 = scmp.eq.s32.totalorder %s8, 2
    %p65 = por %p63, %p64
    %p66 = scmp.ne.s32.totalorder %s58, %s61
    %p67 = scmp.eq.s32.totalorder %s8, 0
    %p68 = por %p66, %p67
    %p69 = scmp.ne.s32.totalorder %s58, %s61
    %p70 = scmp.eq.s32.totalorder %s13, 2
    %p71 = por %p69, %p70
    %p72 = scmp.ne.s32.totalorder %s61, %s62
    %p73 = scmp.eq.s32.totalorder %s13, 0
    %p74 = por %p72, %p73
    %p75 = scmp.ne.s32.totalorder %s61, %s62
    %p76 = scmp.eq.s32.totalorder %s14, 2
    %p77 = por %p75, %p76
    %p79 = scmp.ne.s32.totalorder %s62, %s78
    %p80 = scmp.eq.s32.totalorder %s14, 0
    %p81 = por %p79, %p80
    %s82 = ssub.s32 %s15, %s27
    %p83 = scmp.eq.s32.totalorder %s82, 0
    %s85 = sadd.s32 %s84, 1
    %s86 = scalar_select %p83, %s84, %s85
    %p89 = pneg %p83
    %p90 = scmp.eq.s32.totalorder %s8, 2
    %p91 = por %p89, %p90
    %p92 = scmp.ne.s32.totalorder %s84, %s87
    %p93 = scmp.eq.s32.totalorder %s8, 0
    %p94 = por %p92, %p93
    %p95 = scmp.ne.s32.totalorder %s84, %s87
    %p96 = scmp.eq.s32.totalorder %s13, 2
    %p97 = por %p95, %p96
    %p98 = scmp.ne.s32.totalorder %s87, %s88
    %p99 = scmp.eq.s32.totalorder %s13, 0
    %p100 = por %p98, %p99
    %p101 = scmp.ne.s32.totalorder %s87, %s88
    %p102 = scmp.eq.s32.totalorder %s14, 2
    %p103 = por %p101, %p102
    %p105 = scmp.ne.s32.totalorder %s88, %s104
    %p106 = scmp.eq.s32.totalorder %s14, 0
    %p107 = por %p105, %p106
    %p108 = scmp.le.s32.totalorder 1, %s8
    %p109 = scmp.lt.s32.totalorder %s8, 4
    %p110 = pnand %p108, %p109
    %p111 = pneg %p110
    // Predicated region
    $region9: #{tpu_custom_call.1} parent=5 // pred_check
      _
    $region10: #{tpu_custom_call.1} parent=5 // pred_check_branch
      %113 = sbr.rel (%p110) target = $region12
    $region11: #{tpu_custom_call.1} parent=5 // pred_region
      %s114 = ssub.s32 %s8, 1
    $region12: #{tpu_custom_call.1} parent=5 // pred_fallthru
      _
    %p115 = scmp.lt.s32.totalorder %s8, 3
    // Predicated region
    $region13: #{tpu_custom_call.1} parent=5 // pred_check
      %p116 = pneg %p115
    $region14: #{tpu_custom_call.1} parent=5 // pred_check_branch
      %118 = sbr.rel (%p116) target = $region16
    $region15: #{tpu_custom_call.1} parent=5 // pred_region
      // Predicated region
      $region17: #{tpu_custom_call.1} parent=15 // pred_check
        %p119 = pneg %p42
      $region18: #{tpu_custom_call.1} parent=15 // pred_check_branch
        %121 = sbr.rel (%p119) target = $region20
      $region19: #{tpu_custom_call.1} parent=15 // pred_region
        %p122 = scmp.lt.s32.totalorder %s15, 2
        %s123 = scalar_select %p122, %s15, 2
        %p124 = scmp.lt.s32.totalorder %s16, 0
        %s125 = scalar_select %p124, %s16, 0
        %s126 = sadd.s32 %s125, %s123
        %s127 = smul.addr %s126, 8
        %s128 = scalar_lea.vmem %s0, %s127
      $region20: #{tpu_custom_call.1} parent=15 // pred_fallthru
        _
      // Predicated region
      $region21: #{tpu_custom_call.1} parent=15 // pred_check
        %p129 = pneg %p68
      $region22: #{tpu_custom_call.1} parent=15 // pred_check_branch
        %131 = sbr.rel (%p129) target = $region24
      $region23: #{tpu_custom_call.1} parent=15 // pred_region
        %p132 = scmp.lt.s32.totalorder %s15, 2
        %s133 = scalar_select %p132, %s15, 2
        %s134 = smul.addr %s133, 8
        %s135 = scalar_lea.vmem %s1, %s134
      $region24: #{tpu_custom_call.1} parent=15 // pred_fallthru
        _
    $region16: #{tpu_custom_call.1} parent=5 // pred_fallthru
      _
    %p136 = scmp.le.s32.totalorder 1, %s8
    %p137 = scmp.lt.s32.totalorder %s8, 4
    %p138 = pnand %p136, %p137
    %p139 = pneg %p138
    // Predicated region
    $region25: #{tpu_custom_call.1} parent=5 // pred_check
      _
    $region26: #{tpu_custom_call.1} parent=5 // pred_check_branch
      %141 = sbr.rel (%p138) target = $region28
    $region27: #{tpu_custom_call.1} parent=5 // pred_region
      %s142 = ssub.s32 %s8, 1
      %p143 = scmp.lt.s32.totalorder %s17, 2
      %s144 = scalar_select %p143, %s17, 2
      %p145 = scmp.lt.s32.totalorder %s18, 0
      %s146 = scalar_select %p145, %s18, 0
      %s147 = sadd.s32 %s146, %s144
      %s148 = smul.addr %s147, 8
      %s149 = scalar_lea.vmem %s0, %s148
      %p150 = pneg %p48
      %p151 = pneg %p45
      %p152 = scmp.lt.s32.totalorder %s17, 2
      %s153 = scalar_select %p152, %s17, 2
      %s154 = smul.addr %s153, 8
      %s155 = scalar_lea.vmem %s1, %s154
      %p156 = pneg %p74
      %p157 = pneg %p71
      %p158 = pneg %p100
      %p159 = pneg %p97
      %p160 = scmp.lt.s32.totalorder %s17, 2
      %s161 = scalar_select %p160, %s17, 2
      %s162 = smul.addr %s161, 8
      %s163 = scalar_lea.vmem %s2, %s162
      %p164 = scmp.lt.s32.totalorder %s17, 2
      %s165 = scalar_select %p164, %s17, 2
      %p166 = scmp.lt.s32.totalorder %s18, 0
      %s167 = scalar_select %p166, %s18, 0
      %s168 = sadd.s32 %s167, %s165
      %s169 = smul.addr %s168, 8
      %s170 = scalar_lea.vmem %s0, %s169
      %p171 = scmp.lt.s32.totalorder %s17, 2
      %s172 = scalar_select %p171, %s17, 2
      %s173 = smul.addr %s172, 8
      %s174 = scalar_lea.vmem %s1, %s173
      %p175 = scmp.lt.s32.totalorder %s17, 2
      %s176 = scalar_select %p175, %s17, 2
      %s177 = smul.addr %s176, 8
      %s178 = scalar_lea.vmem %s2, %s177
      %v179 = vld [vmem:[%s170] sm:$0xff]
      %v180 = vld [vmem:[%s174] sm:$0xff]
      %v181 = vlaneseq
      %v182 = vand.u32 %v181, 127
      %s183 = smul.u32 %s18, 32
      %v184 = vstv %s183
      %v185 = vadd.s32 %v182, %v184
      %186 = vset.pattern.permute.xlu0 0
      %187 = vperm.xlu0 %186, %v180
      %v188 = vpop.permute.xlu0 %187
      %vm189 = vcmp.eq.s32.totalorder %v185, %v188
      %v190 = vsel %vm189, %v179, 0.0
      %vm191 = vcmask 261120
      %v192 = vsel %vm191, %v190, 0.0
      %193 = vadd.xlane.f32.xlu0 %v192
      %v194 = vpop.xlane.xlu0 %193
      %v195 = vsel %vm191, %v179, -inf
      %196 = vmax.xlane.f32.xlu0 %v195
      %v197 = vpop.xlane.xlu0 %196
      %v198 = vsub.f32 %v179, %v197
      %v199 = vmul.f32 %v198, 1.442695
      %v200 = vpow.pop %v199
      %v201 = vsel %vm191, %v200, 0.0
      %202 = vadd.xlane.f32.xlu0 %v201
      %v203 = vpop.xlane.xlu0 %202
      %v204 = vlog2.pop %v203
      %v205 = vmul.f32 %v204, 0.6931472
      %v206 = vadd.f32 %v197, %v205
      %v207 = vsub.f32 %v206, %v194
      %vm208 = vcmask 7168
      %209 = vst.msk [vmem:[%s178] sm:$0xff] %vm208, %v207
      %p210 = scmp.lt.s32.totalorder %s17, 2
      %s211 = scalar_select %p210, %s17, 2
      %s212 = smul.addr %s211, 8
      %s213 = scalar_lea.vmem %s2, %s212
      // Predicated region
      $region29: #{tpu_custom_call.1} parent=27 // pred_check
        %p214 = pneg %p97
      $region30: #{tpu_custom_call.1} parent=27 // pred_check_branch
        %216 = sbr.rel (%p214) target = $region32
      $region31: #{tpu_custom_call.1} parent=27 // pred_region
        _
      $region32: #{tpu_custom_call.1} parent=27 // pred_fallthru
        _
    $region28: #{tpu_custom_call.1} parent=5 // pred_fallthru
      _
    %p217 = scmp.le.s32.totalorder 2, %s8
    // Predicated region
    $region33: #{tpu_custom_call.1} parent=5 // pred_check
      %p218 = pneg %p217
    $region34: #{tpu_custom_call.1} parent=5 // pred_check_branch
      %220 = sbr.rel (%p218) target = $region36
    $region35: #{tpu_custom_call.1} parent=5 // pred_region
      %s221 = ssub.s32 %s8, 2
      // Predicated region
      $region37: #{tpu_custom_call.1} parent=35 // pred_check
        %p222 = pneg %p103
      $region38: #{tpu_custom_call.1} parent=35 // pred_check_branch
        %224 = sbr.rel (%p222) target = $region40
      $region39: #{tpu_custom_call.1} parent=35 // pred_region
        %p225 = scmp.lt.s32.totalorder %s19, 2
        %s226 = scalar_select %p225, %s19, 2
        %s227 = smul.addr %s226, 8
        %s228 = scalar_lea.vmem %s2, %s227
      $region40: #{tpu_custom_call.1} parent=35 // pred_fallthru
        _
    $region36: #{tpu_custom_call.1} parent=5 // pred_fallthru
      _
  $region6: #{tpu_custom_call.1} parent=0 // loop_footer
    %s12 = sadd.s32 1, %s8
  $region7: #{tpu_custom_call.1} parent=0 // loop_footer_branch
    %7 = sbr.rel target = $region3
  $region8: #{tpu_custom_call.1} parent=0 // loop_exit
    _

</llo_original>
